<compile_context>
chip_gen: v7x
topology: tpu7x:2x2x1
jax: 0.10.0
libtpu: 0.0.40
codegen_flags: <defaults>
</compile_context>

<pallas_src>
import functools

import jax
import jax.numpy as jnp
from jax import lax
from jax.experimental import pallas as pl
from jax.experimental.pallas import tpu as pltpu

EPS = 1e-5    # PyTorch BatchNorm1d default
LANE = 128    # vreg lane width


def _round_up(n, m):
    return ((n + m - 1) // m) * m


def _bn_train(x, gamma, beta):
    """Training-mode BatchNorm1d over the batch axis (biased var), folded apply.

    gamma/beta are zero in padded lanes, so padded activation lanes stay 0."""
    mean = jnp.mean(x, axis=0, keepdims=True)
    centered = x - mean
    var = jnp.mean(centered * centered, axis=0, keepdims=True)
    scale = gamma * lax.rsqrt(var + EPS)          # rsqrt -> EUP slot
    return centered * scale + beta                # 2 VPU ops per element


def dvfs_kernel(n_layers, out_sz, x_ref, vecs_ref, w_ref, out_ref):
    """Inputs (all zero-padded to PAD = 128 lanes):
         x_ref    : (B, PAD)                   f32  (padded lanes are 0)
         vecs_ref : (2 + 3*L + 1, PAD)         f32  packed per-feature vectors
                    rows: [bn_in_g, bn_in_b, (b_i, bn_g_i, bn_b_i)*L, b_out]
         w_ref    : (L + 1, PAD, PAD)          f32  packed (in, out) weights
       Output:
         out_ref  : (B, PAD)                   f32  softmax probs (padded lanes 0)
    """
    x = x_ref[...]            # (B, PAD) f32, full-width unmasked load
    vecs = vecs_ref[...]      # (n_rows, PAD) f32, one full load

    # Input BatchNorm1d(n_cont): zero gamma/beta keep padded lanes at exactly 0.
    x = _bn_train(x, vecs[0:1, :], vecs[1:2, :])

    row = 2
    for li in range(n_layers):
        w = w_ref[li]                      # (PAD, PAD) f32, zero-padded
        b = vecs[row + 0:row + 1, :]
        g = vecs[row + 1:row + 2, :]
        be = vecs[row + 2:row + 3, :]
        row += 3
        # Linear (MXU, f32 accumulate) -> ReLU -> BN; Dropout(p=0) == identity.
        x = jnp.dot(x, w, preferred_element_type=jnp.float32) + b
        x = jnp.maximum(x, 0.0)
        x = _bn_train(x, g, be)

    # Output Linear + softmax over dim=1 (features).
    w_out = w_ref[n_layers]
    b_out = vecs[row:row + 1, :]
    logits = jnp.dot(x, w_out, preferred_element_type=jnp.float32) + b_out

    # Padded lanes would otherwise contribute exp(0)=1 each to the denominator:
    # mask them to a very negative value before max/exp.
    lane = lax.broadcasted_iota(jnp.int32, logits.shape, 1)
    logits = jnp.where(lane < out_sz, logits, jnp.float32(-1e30))
    m = jnp.max(logits, axis=1, keepdims=True)
    e = jnp.exp(logits - m)
    denom = jnp.sum(e, axis=1, keepdims=True)
    out_ref[...] = (e * pl.reciprocal(denom)).astype(out_ref.dtype)  # exact recip


def pack_params(params, n_cont, szs, out_sz):
    """One-time packing of all parameters into two 128-lane-padded f32 arrays."""
    szs = list(szs)
    pad = _round_up(max([n_cont] + szs + [out_sz]), LANE)

    def pad_vec(v):
        v = jnp.asarray(v, jnp.float32).reshape(-1)
        return jnp.pad(v, (0, pad - v.shape[0]))

    g_in, b_in = params["bn_in"]
    rows = [pad_vec(g_in), pad_vec(b_in)]
    for (_, b, g, be) in params["layers"]:
        rows += [pad_vec(b), pad_vec(g), pad_vec(be)]
    w_out, b_out = params["out"]
    rows.append(pad_vec(b_out))
    vecs = jnp.stack(rows, axis=0)                       # (2 + 3L + 1, PAD) f32

    def pad_w(w):
        w = jnp.asarray(w, jnp.float32)
        return jnp.pad(w, ((0, pad - w.shape[0]), (0, pad - w.shape[1])))

    weights = jnp.stack([pad_w(w) for (w, _, _, _) in params["layers"]]
                        + [pad_w(w_out)], axis=0)        # (L+1, PAD, PAD) f32

    return {"vecs": vecs, "weights": weights, "pad": pad,
            "n_cont": n_cont, "n_layers": len(szs), "out_sz": out_sz}


def dvfs_forward(x_cont, packed):
    n_cont, out_sz = packed["n_cont"], packed["out_sz"]
    n_layers, pad = packed["n_layers"], packed["pad"]
    batch = x_cont.shape[0]

    # Lane-dense input: zero-pad the feature dim to PAD outside the kernel.
    x_pad = jnp.pad(x_cont.astype(jnp.float32), ((0, 0), (0, pad - n_cont)))

    kernel = functools.partial(dvfs_kernel, n_layers, out_sz)

    # Advisory cost estimate (kernel is launch/DMA-overhead bound at toy shapes).
    flops = 2 * batch * pad * pad * (n_layers + 1)
    transcendentals = batch * pad + batch + (n_layers + 1) * pad  # exp+recip+rsqrt
    bytes_accessed = (x_pad.size + packed["vecs"].size
                      + packed["weights"].size + batch * pad) * 4

    vmem = pltpu.MemorySpace.VMEM
    probs_pad = pl.pallas_call(
        kernel,
        out_shape=jax.ShapeDtypeStruct((batch, pad), jnp.float32),
        in_specs=[pl.BlockSpec(memory_space=vmem)] * 3,
        out_specs=pl.BlockSpec(memory_space=vmem),
        cost_estimate=pl.CostEstimate(
            flops=int(flops),
            transcendentals=int(transcendentals),
            bytes_accessed=int(bytes_accessed)),
    )(x_pad, packed["vecs"], packed["weights"])

    # Lane-dense (B, PAD) kernel output; slice to out_sz and apply torch .squeeze().
    return jnp.squeeze(probs_pad[:, :out_sz])


def init_params(key, n_cont, szs, out_sz):
    """Deterministic init matching the module's __init__ shapes.
    Linear weights (stored pre-transposed to (in, out)): kaiming_normal_.
    Linear bias: U(-1/sqrt(fan_in), 1/sqrt(fan_in)).  BatchNorm: gamma=1, beta=0."""
    sizes = [n_cont] + list(szs)
    params = {"bn_in": (jnp.ones((n_cont,), jnp.float32),
                        jnp.zeros((n_cont,), jnp.float32))}
    layers = []
    for i in range(len(sizes) - 1):
        fan_in, fan_out = sizes[i], sizes[i + 1]
        key, kw, kb = jax.random.split(key, 3)
        w = jax.random.normal(kw, (fan_in, fan_out), jnp.float32) * jnp.sqrt(2.0 / fan_in)
        bound = 1.0 / jnp.sqrt(float(fan_in))
        b = jax.random.uniform(kb, (fan_out,), jnp.float32, -bound, bound)
        layers.append((w, b,
                       jnp.ones((fan_out,), jnp.float32),
                       jnp.zeros((fan_out,), jnp.float32)))
    params["layers"] = layers

    fan_in = sizes[-1]
    key, kw, kb = jax.random.split(key, 3)
    w_out = jax.random.normal(kw, (fan_in, out_sz), jnp.float32) * jnp.sqrt(2.0 / fan_in)
    bound = 1.0 / jnp.sqrt(float(fan_in))
    b_out = jax.random.uniform(kb, (out_sz,), jnp.float32, -bound, bound)
    params["out"] = (w_out, b_out)
    return params


def dvfs_reference(x, params):
    """Pure-JAX f32 reference of the PyTorch forward (training-mode BN)."""
    def bn(x, g, b):
        mean = x.mean(0, keepdims=True)
        var = ((x - mean) ** 2).mean(0, keepdims=True)
        return (x - mean) / jnp.sqrt(var + EPS) * g + b

    g0, b0 = params["bn_in"]
    x = bn(x, g0, b0)
    for (w, bb, gg, be) in params["layers"]:
        x = jnp.maximum(x @ w + bb, 0.0)
        x = bn(x, gg, be)
    w_out, b_out = params["out"]
    logits = x @ w_out + b_out
    return jax.nn.softmax(logits, axis=1)


if __name__ == "__main__":
    # DVFSModel(n_cont=16, out_sz=8, szs=[32, 32], drops=[0.0, 0.0], use_bn=True),
    # batch = 8.
    batch, n_cont, out_sz = 8, 16, 8
    szs = [32, 32]

    key = jax.random.PRNGKey(0)
    key, kx, kp = jax.random.split(key, 3)
    x = jax.random.normal(kx, (batch, n_cont), jnp.float32)
    params = init_params(kp, n_cont, szs, out_sz)
    packed = pack_params(params, n_cont, szs, out_sz)   # one-time padding/packing

    out = dvfs_forward(x, packed)
    out = jax.block_until_ready(out)

    assert out.shape == (batch, out_sz), out.shape
    # exact reciprocal -> softmax rows sum to 1 within f32 rounding
    assert jnp.allclose(jnp.sum(out, axis=1), 1.0, atol=1e-5)
    # matches f32 reference (loose bound covers MXU default matmul precision)
    ref = dvfs_reference(x, params)
    assert jnp.allclose(out, ref, atol=2e-2), float(jnp.max(jnp.abs(out - ref)))
    print("KERNEL_OK")
</pallas_src>

<mosaic_0001>
module attributes {stable_mosaic.version = 11 : i64} {
  func.func @dvfs_kernel(%arg0: memref<8x128xf32, #tpu.memory_space<vmem>>, %arg1: memref<9x128xf32, #tpu.memory_space<vmem>>, %arg2: memref<3x128x128xf32, #tpu.memory_space<vmem>>, %arg3: memref<8x128xf32, #tpu.memory_space<vmem>>) attributes {dimension_semantics = [], scalar_prefetch = 0 : i64, scratch_operands = 0 : i64, tpu.core_type = #tpu.core_type<tc>} {
    %c0 = arith.constant 0 : index
    %c0_0 = arith.constant 0 : index
    %0 = vector.load %arg0[%c0, %c0_0] : memref<8x128xf32, #tpu.memory_space<vmem>>, vector<8x128xf32>
    %c0_1 = arith.constant 0 : index
    %c0_2 = arith.constant 0 : index
    %1 = vector.load %arg1[%c0_1, %c0_2] : memref<9x128xf32, #tpu.memory_space<vmem>>, vector<9x128xf32>
    %2 = vector.extract_strided_slice %1 {offsets = [0, 0], sizes = [1, 128], strides = [1, 1]} : vector<9x128xf32> to vector<1x128xf32>
    %3 = vector.extract_strided_slice %1 {offsets = [1, 0], sizes = [1, 128], strides = [1, 1]} : vector<9x128xf32> to vector<1x128xf32>
    %cst = arith.constant dense<0.000000e+00> : vector<128xf32>
    %4 = vector.multi_reduction <add>, %0, %cst [0] : vector<8x128xf32> to vector<128xf32>
    %5 = vector.shape_cast %4 : vector<128xf32> to vector<1x128xf32>
    %cst_3 = arith.constant 8.000000e+00 : f32
    %6 = vector.broadcast %cst_3 : f32 to vector<1x128xf32>
    %7 = arith.divf %5, %6 : vector<1x128xf32>
    %8 = vector.broadcast %7 : vector<1x128xf32> to vector<8x128xf32>
    %9 = arith.subf %0, %8 : vector<8x128xf32>
    %10 = arith.mulf %9, %9 : vector<8x128xf32>
    %cst_4 = arith.constant dense<0.000000e+00> : vector<128xf32>
    %11 = vector.multi_reduction <add>, %10, %cst_4 [0] : vector<8x128xf32> to vector<128xf32>
    %12 = vector.shape_cast %11 : vector<128xf32> to vector<1x128xf32>
    %cst_5 = arith.constant 8.000000e+00 : f32
    %13 = vector.broadcast %cst_5 : f32 to vector<1x128xf32>
    %14 = arith.divf %12, %13 : vector<1x128xf32>
    %cst_6 = arith.constant 9.99999974E-6 : f32
    %15 = vector.broadcast %cst_6 : f32 to vector<1x128xf32>
    %16 = arith.addf %14, %15 : vector<1x128xf32>
    %17 = math.rsqrt %16 : vector<1x128xf32>
    %18 = arith.mulf %2, %17 : vector<1x128xf32>
    %19 = vector.broadcast %18 : vector<1x128xf32> to vector<8x128xf32>
    %20 = arith.mulf %9, %19 : vector<8x128xf32>
    %21 = vector.broadcast %3 : vector<1x128xf32> to vector<8x128xf32>
    %22 = arith.addf %20, %21 : vector<8x128xf32>
    %c0_7 = arith.constant 0 : index
    %c0_8 = arith.constant 0 : index
    %c0_9 = arith.constant 0 : index
    %23 = vector.load %arg2[%c0_7, %c0_8, %c0_9] : memref<3x128x128xf32, #tpu.memory_space<vmem>>, vector<1x128x128xf32>
    %24 = vector.shape_cast %23 : vector<1x128x128xf32> to vector<128x128xf32>
    %25 = vector.extract_strided_slice %1 {offsets = [2, 0], sizes = [1, 128], strides = [1, 1]} : vector<9x128xf32> to vector<1x128xf32>
    %26 = vector.extract_strided_slice %1 {offsets = [3, 0], sizes = [1, 128], strides = [1, 1]} : vector<9x128xf32> to vector<1x128xf32>
    %27 = vector.extract_strided_slice %1 {offsets = [4, 0], sizes = [1, 128], strides = [1, 1]} : vector<9x128xf32> to vector<1x128xf32>
    %cst_10 = arith.constant dense<0.000000e+00> : vector<8x128xf32>
    %28 = tpu.matmul %22, %24, %cst_10 {dimension_numbers = #tpu.dot_dimension_numbers<[1], [0], [0], [1], [0, 0, 1, 1], [], []>} : vector<8x128xf32>, vector<128x128xf32>, vector<8x128xf32> -> vector<8x128xf32>
    %29 = vector.broadcast %25 : vector<1x128xf32> to vector<8x128xf32>
    %30 = arith.addf %28, %29 : vector<8x128xf32>
    %cst_11 = arith.constant 0.000000e+00 : f32
    %31 = vector.broadcast %cst_11 : f32 to vector<8x128xf32>
    %32 = arith.maximumf %30, %31 : vector<8x128xf32>
    %cst_12 = arith.constant dense<0.000000e+00> : vector<128xf32>
    %33 = vector.multi_reduction <add>, %32, %cst_12 [0] : vector<8x128xf32> to vector<128xf32>
    %34 = vector.shape_cast %33 : vector<128xf32> to vector<1x128xf32>
    %cst_13 = arith.constant 8.000000e+00 : f32
    %35 = vector.broadcast %cst_13 : f32 to vector<1x128xf32>
    %36 = arith.divf %34, %35 : vector<1x128xf32>
    %37 = vector.broadcast %36 : vector<1x128xf32> to vector<8x128xf32>
    %38 = arith.subf %32, %37 : vector<8x128xf32>
    %39 = arith.mulf %38, %38 : vector<8x128xf32>
    %cst_14 = arith.constant dense<0.000000e+00> : vector<128xf32>
    %40 = vector.multi_reduction <add>, %39, %cst_14 [0] : vector<8x128xf32> to vector<128xf32>
    %41 = vector.shape_cast %40 : vector<128xf32> to vector<1x128xf32>
    %cst_15 = arith.constant 8.000000e+00 : f32
    %42 = vector.broadcast %cst_15 : f32 to vector<1x128xf32>
    %43 = arith.divf %41, %42 : vector<1x128xf32>
    %cst_16 = arith.constant 9.99999974E-6 : f32
    %44 = vector.broadcast %cst_16 : f32 to vector<1x128xf32>
    %45 = arith.addf %43, %44 : vector<1x128xf32>
    %46 = math.rsqrt %45 : vector<1x128xf32>
    %47 = arith.mulf %26, %46 : vector<1x128xf32>
    %48 = vector.broadcast %47 : vector<1x128xf32> to vector<8x128xf32>
    %49 = arith.mulf %38, %48 : vector<8x128xf32>
    %50 = vector.broadcast %27 : vector<1x128xf32> to vector<8x128xf32>
    %51 = arith.addf %49, %50 : vector<8x128xf32>
    %c1 = arith.constant 1 : index
    %c0_17 = arith.constant 0 : index
    %c0_18 = arith.constant 0 : index
    %52 = vector.load %arg2[%c1, %c0_17, %c0_18] : memref<3x128x128xf32, #tpu.memory_space<vmem>>, vector<1x128x128xf32>
    %53 = vector.shape_cast %52 : vector<1x128x128xf32> to vector<128x128xf32>
    %54 = vector.extract_strided_slice %1 {offsets = [5, 0], sizes = [1, 128], strides = [1, 1]} : vector<9x128xf32> to vector<1x128xf32>
    %55 = vector.extract_strided_slice %1 {offsets = [6, 0], sizes = [1, 128], strides = [1, 1]} : vector<9x128xf32> to vector<1x128xf32>
    %56 = vector.extract_strided_slice %1 {offsets = [7, 0], sizes = [1, 128], strides = [1, 1]} : vector<9x128xf32> to vector<1x128xf32>
    %cst_19 = arith.constant dense<0.000000e+00> : vector<8x128xf32>
    %57 = tpu.matmul %51, %53, %cst_19 {dimension_numbers = #tpu.dot_dimension_numbers<[1], [0], [0], [1], [0, 0, 1, 1], [], []>} : vector<8x128xf32>, vector<128x128xf32>, vector<8x128xf32> -> vector<8x128xf32>
    %58 = vector.broadcast %54 : vector<1x128xf32> to vector<8x128xf32>
    %59 = arith.addf %57, %58 : vector<8x128xf32>
    %cst_20 = arith.constant 0.000000e+00 : f32
    %60 = vector.broadcast %cst_20 : f32 to vector<8x128xf32>
    %61 = arith.maximumf %59, %60 : vector<8x128xf32>
    %cst_21 = arith.constant dense<0.000000e+00> : vector<128xf32>
    %62 = vector.multi_reduction <add>, %61, %cst_21 [0] : vector<8x128xf32> to vector<128xf32>
    %63 = vector.shape_cast %62 : vector<128xf32> to vector<1x128xf32>
    %cst_22 = arith.constant 8.000000e+00 : f32
    %64 = vector.broadcast %cst_22 : f32 to vector<1x128xf32>
    %65 = arith.divf %63, %64 : vector<1x128xf32>
    %66 = vector.broadcast %65 : vector<1x128xf32> to vector<8x128xf32>
    %67 = arith.subf %61, %66 : vector<8x128xf32>
    %68 = arith.mulf %67, %67 : vector<8x128xf32>
    %cst_23 = arith.constant dense<0.000000e+00> : vector<128xf32>
    %69 = vector.multi_reduction <add>, %68, %cst_23 [0] : vector<8x128xf32> to vector<128xf32>
    %70 = vector.shape_cast %69 : vector<128xf32> to vector<1x128xf32>
    %cst_24 = arith.constant 8.000000e+00 : f32
    %71 = vector.broadcast %cst_24 : f32 to vector<1x128xf32>
    %72 = arith.divf %70, %71 : vector<1x128xf32>
    %cst_25 = arith.constant 9.99999974E-6 : f32
    %73 = vector.broadcast %cst_25 : f32 to vector<1x128xf32>
    %74 = arith.addf %72, %73 : vector<1x128xf32>
    %75 = math.rsqrt %74 : vector<1x128xf32>
    %76 = arith.mulf %55, %75 : vector<1x128xf32>
    %77 = vector.broadcast %76 : vector<1x128xf32> to vector<8x128xf32>
    %78 = arith.mulf %67, %77 : vector<8x128xf32>
    %79 = vector.broadcast %56 : vector<1x128xf32> to vector<8x128xf32>
    %80 = arith.addf %78, %79 : vector<8x128xf32>
    %c2 = arith.constant 2 : index
    %c0_26 = arith.constant 0 : index
    %c0_27 = arith.constant 0 : index
    %81 = vector.load %arg2[%c2, %c0_26, %c0_27] : memref<3x128x128xf32, #tpu.memory_space<vmem>>, vector<1x128x128xf32>
    %82 = vector.shape_cast %81 : vector<1x128x128xf32> to vector<128x128xf32>
    %83 = vector.extract_strided_slice %1 {offsets = [8, 0], sizes = [1, 128], strides = [1, 1]} : vector<9x128xf32> to vector<1x128xf32>
    %cst_28 = arith.constant dense<0.000000e+00> : vector<8x128xf32>
    %84 = tpu.matmul %80, %82, %cst_28 {dimension_numbers = #tpu.dot_dimension_numbers<[1], [0], [0], [1], [0, 0, 1, 1], [], []>} : vector<8x128xf32>, vector<128x128xf32>, vector<8x128xf32> -> vector<8x128xf32>
    %85 = vector.broadcast %83 : vector<1x128xf32> to vector<8x128xf32>
    %86 = arith.addf %84, %85 : vector<8x128xf32>
    %87 = tpu.iota {dimensions = array<i32: 1>} : vector<8x128xi32>
    %c8_i32 = arith.constant 8 : i32
    %88 = vector.broadcast %c8_i32 : i32 to vector<8x128xi32>
    %89 = arith.cmpi slt, %87, %88 : vector<8x128xi32>
    %cst_29 = arith.constant -1.000000e+30 : f32
    %90 = vector.broadcast %cst_29 : f32 to vector<8x128xf32>
    %91 = arith.select %89, %86, %90 : vector<8x128xi1>, vector<8x128xf32>
    %cst_30 = arith.constant dense<0xFF800000> : vector<8xf32>
    %92 = vector.multi_reduction <maximumf>, %91, %cst_30 [1] : vector<8x128xf32> to vector<8xf32>
    %93 = vector.shape_cast %92 : vector<8xf32> to vector<8x1xf32>
    %94 = vector.broadcast %93 : vector<8x1xf32> to vector<8x128xf32>
    %95 = arith.subf %91, %94 : vector<8x128xf32>
    %96 = math.exp %95 : vector<8x128xf32>
    %cst_31 = arith.constant dense<0.000000e+00> : vector<8xf32>
    %97 = vector.multi_reduction <add>, %96, %cst_31 [1] : vector<8x128xf32> to vector<8xf32>
    %98 = vector.shape_cast %97 : vector<8xf32> to vector<8x1xf32>
    %99 = tpu.reciprocal %98 : vector<8x1xf32> -> vector<8x1xf32>
    %100 = vector.broadcast %99 : vector<8x1xf32> to vector<8x128xf32>
    %101 = arith.mulf %96, %100 : vector<8x128xf32>
    %c0_32 = arith.constant 0 : index
    %c0_33 = arith.constant 0 : index
    %102 = vector.load %arg3[%c0_32, %c0_33] : memref<8x128xf32, #tpu.memory_space<vmem>>, vector<8x128xf32>
    tpu.vector_store %arg3[%c0_32, %c0_33], %101 {strides = array<i32>} : memref<8x128xf32, #tpu.memory_space<vmem>>, vector<8x128xf32>,
    return
  }
}

</mosaic_0001>

<llo_original>
// kernel: tpu_custom_call.1
$region0: #{tpu_custom_call.1}
  #allocation0 [shape = 'u32[]', space=smem, size = 0x4, offset = 0x4, fixed_abs, tag = 'smem constant byte address 0x4 - core index']
  #allocation1 [shape = 'u32[144,128]{1,0:T(1,128)}', space=vmem, size = 0x12000, scoped, tag = 'internal scratch']
  %s0 = inlined_call_operand.hbm [shape: f32[8,128], index: 0, kind: input, shape index: {}]
  %s1 = inlined_call_operand.hbm [shape: f32[9,128], index: 1, kind: input, shape index: {}]
  %s2 = inlined_call_operand.hbm [shape: f32[3,128,128], index: 2, kind: input, shape index: {}]
  %s3 = inlined_call_operand.hbm [shape: f32[8,128], index: 3, kind: output, shape index: {}]
  %s4 = sld [smem:[#allocation0]]
  $region34: #{tpu_custom_call.1} parent=0
    _
  %s6 = ssub.s32 1, %s4
  %s7 = scalar_select 0, %s6, %s4
  $region1: #{tpu_custom_call.1} parent=0
    #allocation2 [shape = 'u8[4096]{0}', space=vmem, size = 0x1000, scoped, tag = 'input window, operand 0, single buffered']
    #allocation3 [shape = 's32[1]{0}', space=sflag, size = 0x4, scoped, tag = 'scoped memory for tpu_custom_call.1']
    #allocation4 [shape = 's32[1]{0}', space=sflag, size = 0x4, scoped, tag = 'scoped memory for tpu_custom_call.1']
    #allocation5 [shape = 'u8[8192]{0}', space=vmem, size = 0x2000, scoped, tag = 'input window, operand 1, single buffered']
    #allocation6 [shape = 's32[1]{0}', space=sflag, size = 0x4, scoped, tag = 'scoped memory for tpu_custom_call.1']
    #allocation7 [shape = 'u8[196608]{0}', space=vmem, size = 0x30000, scoped, tag = 'input window, operand 2, single buffered']
    #allocation8 [shape = 'u8[4096]{0}', space=vmem, size = 0x1000, scoped, tag = 'output window, operand 0, single buffered']
    %8 = vsyncpa [#allocation3], 0
    %9 = vsyncpa [#allocation6], 0
    %10 = vsyncpa [#allocation4], 0
    // Predicated region
    $region2: #{tpu_custom_call.1} parent=1 // pred_check
      _
    $region3: #{tpu_custom_call.1} parent=1 // pred_check_branch
      %12 = sbr.rel (0) target = $region5
    $region4: #{tpu_custom_call.1} parent=1 // pred_region
      %s14 = ssub.s32 128, 128
      %15 = vsyncadd [#allocation3], %s14
      %s17 = sshll.u32 [#allocation2], 4
      %s18 = int_to_ptr.vmem [resolvable:$true] %s17
      %20 = dma.hbm_to_vmem [thread:$0]  %s0, 128, %s18, [#allocation3]
    $region5: #{tpu_custom_call.1} parent=1 // pred_fallthru
      _
    // Predicated region
    $region6: #{tpu_custom_call.1} parent=1 // pred_check
      _
    $region7: #{tpu_custom_call.1} parent=1 // pred_check_branch
      %22 = sbr.rel (0) target = $region9
    $region8: #{tpu_custom_call.1} parent=1 // pred_region
      %s24 = ssub.s32 256, 256
      %25 = vsyncadd [#allocation6], %s24
      %s26 = sshll.u32 [#allocation5], 4
      %s27 = int_to_ptr.vmem [resolvable:$true] %s26
      %32 = dma.hbm_to_vmem [thread:$0]  %s1, 256, %s27, [#allocation6], 128, 128, 8
    $region9: #{tpu_custom_call.1} parent=1 // pred_fallthru
      _
    // Predicated region
    $region10: #{tpu_custom_call.1} parent=1 // pred_check
      _
    $region11: #{tpu_custom_call.1} parent=1 // pred_check_branch
      %34 = sbr.rel (0) target = $region13
    $region12: #{tpu_custom_call.1} parent=1 // pred_region
      %s36 = ssub.s32 6144, 6144
      %37 = vsyncadd [#allocation6], %s36
      %s38 = sshll.u32 [#allocation7], 4
      %s39 = int_to_ptr.vmem [resolvable:$true] %s38
      %44 = dma.hbm_to_vmem [thread:$0]  %s2, 6144, %s39, [#allocation6], 128, 128, 8
    $region13: #{tpu_custom_call.1} parent=1 // pred_fallthru
      _
    // Predicated region
    $region14: #{tpu_custom_call.1} parent=1 // pred_check
      _
    $region15: #{tpu_custom_call.1} parent=1 // pred_check_branch
      %46 = sbr.rel (0) target = $region17
    $region16: #{tpu_custom_call.1} parent=1 // pred_region
      %47 = dma.done [#allocation3], 128
    $region17: #{tpu_custom_call.1} parent=1 // pred_fallthru
      _
    // Predicated region
    $region18: #{tpu_custom_call.1} parent=1 // pred_check
      _
    $region19: #{tpu_custom_call.1} parent=1 // pred_check_branch
      %49 = sbr.rel (0) target = $region21
    $region20: #{tpu_custom_call.1} parent=1 // pred_region
      %50 = dma.done [#allocation6], 256
    $region21: #{tpu_custom_call.1} parent=1 // pred_fallthru
      _
    // Predicated region
    $region22: #{tpu_custom_call.1} parent=1 // pred_check
      _
    $region23: #{tpu_custom_call.1} parent=1 // pred_check_branch
      %52 = sbr.rel (0) target = $region25
    $region24: #{tpu_custom_call.1} parent=1 // pred_region
      %53 = dma.done [#allocation6], 6144
    $region25: #{tpu_custom_call.1} parent=1 // pred_fallthru
      _
    %v54 = vld [vmem:[#allocation2] sm:$0xff]
    %v55 = vld [vmem:[#allocation5] sm:$0xff]
    %v56 = vld [vmem:[#allocation5 + $0x8] sm:$0x1]
    %v57 = vrot.slane %v54, 4
    %v58 = vadd.f32 %v54, %v57
    %v59 = vrot.slane %v58, 2
    %v60 = vadd.f32 %v58, %v59
    %v61 = vrot.slane %v60, 1
    %v62 = vadd.f32 %v60, %v61
    %v63 = vrcp.pop 8.0
    %v64 = vmul.f32 %v62, %v63
    %v65 = vsub.f32 %v54, %v64
    %v66 = vmul.f32 %v65, %v65
    %v67 = vrot.slane %v66, 4
    %v68 = vadd.f32 %v66, %v67
    %v69 = vrot.slane %v68, 2
    %v70 = vadd.f32 %v68, %v69
    %v71 = vrot.slane %v70, 1
    %v72 = vadd.f32 %v70, %v71
    %v73 = vmul.f32 %v72, %v63
    %v74 = vadd.f32 %v73, 1e-05
    %v75 = vrsqrt.pop %v74
    %v76 = vmul.f32 %v55, %v75
    %v77 = vlaneseq
    %v78 = vshrl.u32 %v77, 7
    %v79 = vsub.s32 0, %v78
    %v80 = vrot.slane %v76, %v79
    %v81 = vmul.f32 %v65, %v80
    %v82 = vlaneseq
    %v83 = vshrl.u32 %v82, 7
    %v84 = vsub.s32 1, %v83
    %v85 = vrot.slane %v55, %v84
    %v86 = vadd.f32 %v81, %v85
    %v87 = vld [vmem:[#allocation7] sm:$0xff]
    %v88 = vld [vmem:[#allocation7 + $0x8] sm:$0xff]
    %v89 = vld [vmem:[#allocation7 + $0x10] sm:$0xff]
    %v90 = vld [vmem:[#allocation7 + $0x18] sm:$0xff]
    %v91 = vld [vmem:[#allocation7 + $0x20] sm:$0xff]
    %v92 = vld [vmem:[#allocation7 + $0x28] sm:$0xff]
    %v93 = vld [vmem:[#allocation7 + $0x30] sm:$0xff]
    %v94 = vld [vmem:[#allocation7 + $0x38] sm:$0xff]
    %v95 = vld [vmem:[#allocation7 + $0x40] sm:$0xff]
    %v96 = vld [vmem:[#allocation7 + $0x48] sm:$0xff]
    %v97 = vld [vmem:[#allocation7 + $0x50] sm:$0xff]
    %v98 = vld [vmem:[#allocation7 + $0x58] sm:$0xff]
    %v99 = vld [vmem:[#allocation7 + $0x60] sm:$0xff]
    %v100 = vld [vmem:[#allocation7 + $0x68] sm:$0xff]
    %v101 = vld [vmem:[#allocation7 + $0x70] sm:$0xff]
    %v102 = vld [vmem:[#allocation7 + $0x78] sm:$0xff]
    %v103 = vlaneseq
    %v104 = vshrl.u32 %v103, 7
    %v105 = vsub.s32 2, %v104
    %v106 = vrot.slane %v55, %v105
    %107 = vmatprep.subr.mxu0 0.0
    %108 = vmatpush1.msra.mxu0 %v87
    %109 = vmatprep.subr.mxu0 0.0
    %110 = vmatpush1.msra.mxu0 %v88
    %111 = vmatprep.subr.mxu0 0.0
    %112 = vmatpush1.msra.mxu0 %v89
    %113 = vmatprep.subr.mxu0 0.0
    %114 = vmatpush1.msra.mxu0 %v90
    %115 = vmatprep.subr.mxu0 0.0
    %116 = vmatpush1.msra.mxu0 %v91
    %117 = vmatprep.subr.mxu0 0.0
    %118 = vmatpush1.msra.mxu0 %v92
    %119 = vmatprep.subr.mxu0 0.0
    %120 = vmatpush1.msra.mxu0 %v93
    %121 = vmatprep.subr.mxu0 0.0
    %122 = vmatpush1.msra.mxu0 %v94
    %123 = vmatprep.subr.mxu0 0.0
    %124 = vmatpush1.msra.mxu0 %v95
    %125 = vmatprep.subr.mxu0 0.0
    %126 = vmatpush1.msra.mxu0 %v96
    %127 = vmatprep.subr.mxu0 0.0
    %128 = vmatpush1.msra.mxu0 %v97
    %129 = vmatprep.subr.mxu0 0.0
    %130 = vmatpush1.msra.mxu0 %v98
    %131 = vmatprep.subr.mxu0 0.0
    %132 = vmatpush1.msra.mxu0 %v99
    %133 = vmatprep.subr.mxu0 0.0
    %134 = vmatpush1.msra.mxu0 %v100
    %135 = vmatprep.subr.mxu0 0.0
    %136 = vmatpush1.msra.mxu0 %v101
    %137 = vmatprep.subr.mxu0 0.0
    %138 = vmatpush1.msra.mxu0 %v102
    %139 = vmatprep.subr.mxu0 0.0
    %140 = vmatpush1.msra.mxu0 0.0
    %141 = vmatprep.subr.mxu0 0.0
    %142 = vmatpush1.msra.mxu0 0.0
    %143 = vmatprep.subr.mxu0 0.0
    %144 = vmatpush1.msra.mxu0 0.0
    %145 = vmatprep.subr.mxu0 0.0
    %146 = vmatpush1.msra.mxu0 0.0
    %147 = vmatprep.subr.mxu0 0.0
    %148 = vmatpush1.msra.mxu0 0.0
    %149 = vmatprep.subr.mxu0 0.0
    %150 = vmatpush1.msra.mxu0 0.0
    %151 = vmatprep.subr.mxu0 0.0
    %152 = vmatpush1.msra.mxu0 0.0
    %153 = vmatprep.subr.mxu0 0.0
    %154 = vmatpush1.msra.mxu0 0.0
    %155 = vmatprep.subr.mxu0 0.0
    %156 = vmatpush1.msra.mxu0 0.0
    %157 = vmatprep.subr.mxu0 0.0
    %158 = vmatpush1.msra.mxu0 0.0
    %159 = vmatprep.subr.mxu0 0.0
    %160 = vmatpush1.msra.mxu0 0.0
    %161 = vmatprep.subr.mxu0 0.0
    %162 = vmatpush1.msra.mxu0 0.0
    %163 = vmatprep.subr.mxu0 0.0
    %164 = vmatpush1.msra.mxu0 0.0
    %165 = vmatprep.subr.mxu0 0.0
    %166 = vmatpush1.msra.mxu0 0.0
    %167 = vmatprep.subr.mxu0 0.0
    %168 = vmatpush1.msra.mxu0 0.0
    %169 = vmatprep.subr.mxu0 0.0
    %170 = vmatpush1.msra.mxu0 0.0
    %171 = vmatprep.mubr.f32.mxu0 0.0
    %172 = vmatmul.mubr.f32.gmra.mrb[0].mxu0 %v86
    %v173 = vpop.f32.mrb[0].mxu0
    %v174 = vadd.f32 %v106, %v173
    %v175 = vpop.f32.mrb[0].mxu0
    %176 = vdwg.mxu0
    %v177 = vmax.f32 %v174, 0.0
    %v178 = vrot.slane %v177, 4
    %v179 = vadd.f32 %v177, %v178
    %v180 = vrot.slane %v179, 2
    %v181 = vadd.f32 %v179, %v180
    %v182 = vrot.slane %v181, 1
    %v183 = vadd.f32 %v181, %v182
    %v184 = vmul.f32 %v183, %v63
    %v185 = vsub.f32 %v177, %v184
    %v186 = vmul.f32 %v185, %v185
    %v187 = vrot.slane %v186, 4
    %v188 = vadd.f32 %v186, %v187
    %v189 = vrot.slane %v188, 2
    %v190 = vadd.f32 %v188, %v189
    %v191 = vrot.slane %v190, 1
    %v192 = vadd.f32 %v190, %v191
    %v193 = vmul.f32 %v192, %v63
    %v194 = vadd.f32 %v193, 1e-05
    %v195 = vrsqrt.pop %v194
    %v196 = vmul.f32 %v55, %v195
    %v197 = vlaneseq
    %v198 = vshrl.u32 %v197, 7
    %v199 = vsub.s32 3, %v198
    %v200 = vrot.slane %v196, %v199
    %v201 = vmul.f32 %v185, %v200
    %v202 = vlaneseq
    %v203 = vshrl.u32 %v202, 7
    %v204 = vsub.s32 4, %v203
    %v205 = vrot.slane %v55, %v204
    %v206 = vadd.f32 %v201, %v205
    %s207 = scalar_lea.vmem [#allocation7], 128
    %v208 = vld [vmem:[%s207] sm:$0xff]
    %v209 = vld [vmem:[%s207 + $0x8] sm:$0xff]
    %v210 = vld [vmem:[%s207 + $0x10] sm:$0xff]
    %v211 = vld [vmem:[%s207 + $0x18] sm:$0xff]
    %v212 = vld [vmem:[%s207 + $0x20] sm:$0xff]
    %v213 = vld [vmem:[%s207 + $0x28] sm:$0xff]
    %v214 = vld [vmem:[%s207 + $0x30] sm:$0xff]
    %v215 = vld [vmem:[%s207 + $0x38] sm:$0xff]
    %v216 = vld [vmem:[%s207 + $0x40] sm:$0xff]
    %v217 = vld [vmem:[%s207 + $0x48] sm:$0xff]
    %v218 = vld [vmem:[%s207 + $0x50] sm:$0xff]
    %v219 = vld [vmem:[%s207 + $0x58] sm:$0xff]
    %v220 = vld [vmem:[%s207 + $0x60] sm:$0xff]
    %v221 = vld [vmem:[%s207 + $0x68] sm:$0xff]
    %v222 = vld [vmem:[%s207 + $0x70] sm:$0xff]
    %v223 = vld [vmem:[%s207 + $0x78] sm:$0xff]
    %v224 = vlaneseq
    %v225 = vshrl.u32 %v224, 7
    %v226 = vsub.s32 5, %v225
    %v227 = vrot.slane %v55, %v226
    %228 = vmatprep.subr.mxu0 0.0
    %229 = vmatpush1.msra.mxu0 %v208
    %230 = vmatprep.subr.mxu0 0.0
    %231 = vmatpush1.msra.mxu0 %v209
    %232 = vmatprep.subr.mxu0 0.0
    %233 = vmatpush1.msra.mxu0 %v210
    %234 = vmatprep.subr.mxu0 0.0
    %235 = vmatpush1.msra.mxu0 %v211
    %236 = vmatprep.subr.mxu0 0.0
    %237 = vmatpush1.msra.mxu0 %v212
    %238 = vmatprep.subr.mxu0 0.0
    %239 = vmatpush1.msra.mxu0 %v213
    %240 = vmatprep.subr.mxu0 0.0
    %241 = vmatpush1.msra.mxu0 %v214
    %242 = vmatprep.subr.mxu0 0.0
    %243 = vmatpush1.msra.mxu0 %v215
    %244 = vmatprep.subr.mxu0 0.0
    %245 = vmatpush1.msra.mxu0 %v216
    %246 = vmatprep.subr.mxu0 0.0
    %247 = vmatpush1.msra.mxu0 %v217
    %248 = vmatprep.subr.mxu0 0.0
    %249 = vmatpush1.msra.mxu0 %v218
    %250 = vmatprep.subr.mxu0 0.0
    %251 = vmatpush1.msra.mxu0 %v219
    %252 = vmatprep.subr.mxu0 0.0
    %253 = vmatpush1.msra.mxu0 %v220
    %254 = vmatprep.subr.mxu0 0.0
    %255 = vmatpush1.msra.mxu0 %v221
    %256 = vmatprep.subr.mxu0 0.0
    %257 = vmatpush1.msra.mxu0 %v222
    %258 = vmatprep.subr.mxu0 0.0
    %259 = vmatpush1.msra.mxu0 %v223
    %260 = vmatprep.subr.mxu0 0.0
    %261 = vmatpush1.msra.mxu0 0.0
    %262 = vmatprep.subr.mxu0 0.0
    %263 = vmatpush1.msra.mxu0 0.0
    %264 = vmatprep.subr.mxu0 0.0
    %265 = vmatpush1.msra.mxu0 0.0
    %266 = vmatprep.subr.mxu0 0.0
    %267 = vmatpush1.msra.mxu0 0.0
    %268 = vmatprep.subr.mxu0 0.0
    %269 = vmatpush1.msra.mxu0 0.0
    %270 = vmatprep.subr.mxu0 0.0
    %271 = vmatpush1.msra.mxu0 0.0
    %272 = vmatprep.subr.mxu0 0.0
    %273 = vmatpush1.msra.mxu0 0.0
    %274 = vmatprep.subr.mxu0 0.0
    %275 = vmatpush1.msra.mxu0 0.0
    %276 = vmatprep.subr.mxu0 0.0
    %277 = vmatpush1.msra.mxu0 0.0
    %278 = vmatprep.subr.mxu0 0.0
    %279 = vmatpush1.msra.mxu0 0.0
    %280 = vmatprep.subr.mxu0 0.0
    %281 = vmatpush1.msra.mxu0 0.0
    %282 = vmatprep.subr.mxu0 0.0
    %283 = vmatpush1.msra.mxu0 0.0
    %284 = vmatprep.subr.mxu0 0.0
    %285 = vmatpush1.msra.mxu0 0.0
    %286 = vmatprep.subr.mxu0 0.0
    %287 = vmatpush1.msra.mxu0 0.0
    %288 = vmatprep.subr.mxu0 0.0
    %289 = vmatpush1.msra.mxu0 0.0
    %290 = vmatprep.subr.mxu0 0.0
    %291 = vmatpush1.msra.mxu0 0.0
    %292 = vmatprep.mubr.f32.mxu0 0.0
    %293 = vmatmul.mubr.f32.gmra.mrb[0].mxu0 %v206
    %v294 = vpop.f32.mrb[0].mxu0
    %v295 = vadd.f32 %v227, %v294
    %v296 = vpop.f32.mrb[0].mxu0
    %297 = vdwg.mxu0
    %v298 = vmax.f32 %v295, 0.0
    %v299 = vrot.slane %v298, 4
    %v300 = vadd.f32 %v298, %v299
    %v301 = vrot.slane %v300, 2
    %v302 = vadd.f32 %v300, %v301
    %v303 = vrot.slane %v302, 1
    %v304 = vadd.f32 %v302, %v303
    %v305 = vmul.f32 %v304, %v63
    %v306 = vsub.f32 %v298, %v305
    %v307 = vmul.f32 %v306, %v306
    %v308 = vrot.slane %v307, 4
    %v309 = vadd.f32 %v307, %v308
    %v310 = vrot.slane %v309, 2
    %v311 = vadd.f32 %v309, %v310
    %v312 = vrot.slane %v311, 1
    %v313 = vadd.f32 %v311, %v312
    %v314 = vmul.f32 %v313, %v63
    %v315 = vadd.f32 %v314, 1e-05
    %v316 = vrsqrt.pop %v315
    %v317 = vmul.f32 %v55, %v316
    %v318 = vlaneseq
    %v319 = vshrl.u32 %v318, 7
    %v320 = vsub.s32 6, %v319
    %v321 = vrot.slane %v317, %v320
    %v322 = vmul.f32 %v306, %v321
    %v323 = vlaneseq
    %v324 = vshrl.u32 %v323, 7
    %v325 = vsub.s32 7, %v324
    %v326 = vrot.slane %v55, %v325
    %v327 = vadd.f32 %v322, %v326
    %s328 = scalar_lea.vmem [#allocation7], 256
    %v329 = vld [vmem:[%s328] sm:$0xff]
    %v330 = vld [vmem:[%s328 + $0x8] sm:$0xff]
    %v331 = vld [vmem:[%s328 + $0x10] sm:$0xff]
    %v332 = vld [vmem:[%s328 + $0x18] sm:$0xff]
    %v333 = vld [vmem:[%s328 + $0x20] sm:$0xff]
    %v334 = vld [vmem:[%s328 + $0x28] sm:$0xff]
    %v335 = vld [vmem:[%s328 + $0x30] sm:$0xff]
    %v336 = vld [vmem:[%s328 + $0x38] sm:$0xff]
    %v337 = vld [vmem:[%s328 + $0x40] sm:$0xff]
    %v338 = vld [vmem:[%s328 + $0x48] sm:$0xff]
    %v339 = vld [vmem:[%s328 + $0x50] sm:$0xff]
    %v340 = vld [vmem:[%s328 + $0x58] sm:$0xff]
    %v341 = vld [vmem:[%s328 + $0x60] sm:$0xff]
    %v342 = vld [vmem:[%s328 + $0x68] sm:$0xff]
    %v343 = vld [vmem:[%s328 + $0x70] sm:$0xff]
    %v344 = vld [vmem:[%s328 + $0x78] sm:$0xff]
    %v345 = vlaneseq
    %v346 = vshrl.u32 %v345, 7
    %v347 = vsub.s32 0, %v346
    %v348 = vrot.slane %v56, %v347
    %349 = vmatprep.subr.mxu0 0.0
    %350 = vmatpush1.msra.mxu0 %v329
    %351 = vmatprep.subr.mxu0 0.0
    %352 = vmatpush1.msra.mxu0 %v330
    %353 = vmatprep.subr.mxu0 0.0
    %354 = vmatpush1.msra.mxu0 %v331
    %355 = vmatprep.subr.mxu0 0.0
    %356 = vmatpush1.msra.mxu0 %v332
    %357 = vmatprep.subr.mxu0 0.0
    %358 = vmatpush1.msra.mxu0 %v333
    %359 = vmatprep.subr.mxu0 0.0
    %360 = vmatpush1.msra.mxu0 %v334
    %361 = vmatprep.subr.mxu0 0.0
    %362 = vmatpush1.msra.mxu0 %v335
    %363 = vmatprep.subr.mxu0 0.0
    %364 = vmatpush1.msra.mxu0 %v336
    %365 = vmatprep.subr.mxu0 0.0
    %366 = vmatpush1.msra.mxu0 %v337
    %367 = vmatprep.subr.mxu0 0.0
    %368 = vmatpush1.msra.mxu0 %v338
    %369 = vmatprep.subr.mxu0 0.0
    %370 = vmatpush1.msra.mxu0 %v339
    %371 = vmatprep.subr.mxu0 0.0
    %372 = vmatpush1.msra.mxu0 %v340
    %373 = vmatprep.subr.mxu0 0.0
    %374 = vmatpush1.msra.mxu0 %v341
    %375 = vmatprep.subr.mxu0 0.0
    %376 = vmatpush1.msra.mxu0 %v342
    %377 = vmatprep.subr.mxu0 0.0
    %378 = vmatpush1.msra.mxu0 %v343
    %379 = vmatprep.subr.mxu0 0.0
    %380 = vmatpush1.msra.mxu0 %v344
    %381 = vmatprep.subr.mxu0 0.0
    %382 = vmatpush1.msra.mxu0 0.0
    %383 = vmatprep.subr.mxu0 0.0
    %384 = vmatpush1.msra.mxu0 0.0
    %385 = vmatprep.subr.mxu0 0.0
    %386 = vmatpush1.msra.mxu0 0.0
    %387 = vmatprep.subr.mxu0 0.0
    %388 = vmatpush1.msra.mxu0 0.0
    %389 = vmatprep.subr.mxu0 0.0
    %390 = vmatpush1.msra.mxu0 0.0
    %391 = vmatprep.subr.mxu0 0.0
    %392 = vmatpush1.msra.mxu0 0.0
    %393 = vmatprep.subr.mxu0 0.0
    %394 = vmatpush1.msra.mxu0 0.0
    %395 = vmatprep.subr.mxu0 0.0
    %396 = vmatpush1.msra.mxu0 0.0
    %397 = vmatprep.subr.mxu0 0.0
    %398 = vmatpush1.msra.mxu0 0.0
    %399 = vmatprep.subr.mxu0 0.0
    %400 = vmatpush1.msra.mxu0 0.0
    %401 = vmatprep.subr.mxu0 0.0
    %402 = vmatpush1.msra.mxu0 0.0
    %403 = vmatprep.subr.mxu0 0.0
    %404 = vmatpush1.msra.mxu0 0.0
    %405 = vmatprep.subr.mxu0 0.0
    %406 = vmatpush1.msra.mxu0 0.0
    %407 = vmatprep.subr.mxu0 0.0
    %408 = vmatpush1.msra.mxu0 0.0
    %409 = vmatprep.subr.mxu0 0.0
    %410 = vmatpush1.msra.mxu0 0.0
    %411 = vmatprep.subr.mxu0 0.0
    %412 = vmatpush1.msra.mxu0 0.0
    %413 = vmatprep.mubr.f32.mxu0 0.0
    %414 = vmatmul.mubr.f32.gmra.mrb[0].mxu0 %v327
    %v415 = vpop.f32.mrb[0].mxu0
    %v416 = vadd.f32 %v348, %v415
    %v417 = vpop.f32.mrb[0].mxu0
    %418 = vdwg.mxu0
    %v419 = vlaneseq
    %v420 = vand.u32 %v419, 127
    %vm421 = vcmp.lt.s32.totalorder %v420, 8
    %v422 = vsel %vm421, %v416, -1e+30
    %423 = vmax.xlane.f32.xlu0 %v422
    %v424 = vpop.xlane.xlu0 %423
    %v425 = vsub.f32 %v422, %v424
    %v426 = vmul.f32 %v425, 1.442695
    %v427 = vpow.pop %v426
    %428 = vadd.xlane.f32.xlu0 %v427
    %v429 = vpop.xlane.xlu0 %428
    %v430 = vrcp.pop %v429
    %v431 = vmul.f32 %v427, %v430
    %432 = vst [vmem:[#allocation8] sm:$0xff] %v431
    // Predicated region
    $region26: #{tpu_custom_call.1} parent=1 // pred_check
      _
    $region27: #{tpu_custom_call.1} parent=1 // pred_check_branch
      %434 = sbr.rel (0) target = $region29
    $region28: #{tpu_custom_call.1} parent=1 // pred_region
      %s436 = ssub.s32 128, 128
      %437 = vsyncadd [#allocation4], %s436
      %s439 = sshll.u32 [#allocation8], 4
      %s440 = int_to_ptr.vmem [resolvable:$true] %s439
      %442 = dma.vmem_to_hbm [thread:$0]  %s440, 128, %s3, [#allocation4]
    $region29: #{tpu_custom_call.1} parent=1 // pred_fallthru
      _
    // Predicated region
    $region30: #{tpu_custom_call.1} parent=1 // pred_check
      _
    $region31: #{tpu_custom_call.1} parent=1 // pred_check_branch
      %444 = sbr.rel (0) target = $region33
    $region32: #{tpu_custom_call.1} parent=1 // pred_region
      %445 = dma.done [#allocation4], 128
    $region33: #{tpu_custom_call.1} parent=1 // pred_fallthru
      _
    %446 = vsyncpa [#allocation3], 1
    %447 = vsyncpa [#allocation6], 1
    %448 = vsyncpa [#allocation4], 1

</llo_original>
